<compile_context>
chip_gen: v7x
topology: tpu7x:2x2x1
jax: 0.10.0
libtpu: 0.0.40
codegen_flags: <defaults>
</compile_context>

<pallas_src>
import functools

import jax
import jax.numpy as jnp
from jax import lax
from jax.experimental import pallas as pl
from jax.experimental.pallas import tpu as pltpu

EPSILON = 1e-5


def mvemb_kernel(seq_ref, x_ref, emb_ref, o_ref, *, block_b):
    # seq_ref: SMEM int32 (B,)          scalar-prefetched sequence lengths
    # x_ref:   VMEM (block_b, T, D)
    # emb_ref: VMEM (block_b, 2, D)     row 0 = mean_emb, row 1 = std_emb
    # o_ref:   VMEM (block_b, T, D)
    i = pl.program_id(0)
    T = x_ref.shape[1]

    # Time-step indices, shared across the rows of this block.
    ids = lax.broadcasted_iota(jnp.int32, (T, 1), 0)

    # Short static loop over the batch rows of this block (block_b <= 8),
    # fully unrolled so the scheduler can interleave the rows.
    for j in range(block_b):
        length_i = seq_ref[i * block_b + j]
        length_f = length_i.astype(jnp.float32)
        inv_len = 1.0 / jnp.maximum(length_f, 1.0)        # guard len==0

        x = x_ref[j].astype(jnp.float32)                  # (T, D)
        mask = (ids < length_i).astype(jnp.float32)       # (T, 1)

        # Single-pass masked statistics (two independent reductions, no
        # mean -> second-pass serial dependency).
        xm = x * mask                                     # (T, D)
        sum_x = jnp.sum(xm, axis=0, keepdims=True)        # (1, D)
        sum_x2 = jnp.sum(xm * x, axis=0, keepdims=True)   # (1, D)
        x_mean = sum_x * inv_len
        x_var = jnp.maximum(sum_x2 * inv_len - x_mean * x_mean, 0.0)
        inv_std = lax.rsqrt(x_var + EPSILON)              # (1, D), EUP

        # Speaker-embedding affine fused with the normalization.
        e = emb_ref[j].astype(jnp.float32)                # (2, D)
        mean_emb = e[0:1, :]                              # (1, D)
        std_emb = e[1:2, :]                               # (1, D)
        scale = std_emb * inv_std                         # (1, D)
        shift = mean_emb - x_mean * scale                 # (1, D)

        o_ref[j] = (x * scale + shift).astype(o_ref.dtype)


def _choose_block_b(B, T, D, itemsize, target_bytes=1 << 20, max_rows=8):
    """Largest divisor of B whose (block_b, T, D) slab fits the byte target,
    capped at max_rows, while keeping >= 2 grid steps when B >= 2 so both
    v7x TensorCores get work."""
    per_row = max(1, T * D * itemsize)
    divisors = [d for d in range(1, B + 1) if B % d == 0]
    fitting = [d for d in divisors if d <= max_rows and d * per_row <= target_bytes]
    bb = max(fitting) if fitting else 1
    if B >= 2:
        while bb > 1 and B // bb < 2:
            smaller = [d for d in divisors if d < bb]
            bb = max(smaller) if smaller else 1
    return bb


def mvemb_condition_forward(x, seq_length, speaker_id, emb_table, emb_dim):
    """x: (B, T, D), seq_length: (B,) int, speaker_id: (B,) int,
    emb_table: (num_of_spk, 2*emb_dim)."""
    B, T, D = x.shape
    assert D == emb_dim

    # Embedding lookup (glue, plain JAX gather), packed as (B, 2, D):
    # row 0 = mean_emb, row 1 = std_emb -> single DMA per grid step.
    emb = emb_table[speaker_id].reshape(B, 2, emb_dim)

    itemsize = jnp.dtype(x.dtype).itemsize
    block_b = _choose_block_b(B, T, D, itemsize)
    grid = (B // block_b,)

    # VMEM budget: double-buffered x + out + emb blocks.
    need = 2 * (2 * block_b * T * D * itemsize
                + block_b * 2 * D * jnp.dtype(emb.dtype).itemsize)
    compiler_kwargs = dict(dimension_semantics=("parallel",))
    if need > (12 << 20):
        # headroom, but stay below the v7x 64 MiB physical VMEM
        compiler_kwargs["vmem_limit_bytes"] = int(min(2 * need + (4 << 20), 60 << 20))

    grid_spec = pltpu.PrefetchScalarGridSpec(
        num_scalar_prefetch=1,                                   # seq_length -> SMEM
        grid=grid,
        in_specs=[
            pl.BlockSpec((block_b, T, D), lambda i, seq: (i, 0, 0)),   # x
            pl.BlockSpec((block_b, 2, D), lambda i, seq: (i, 0, 0)),   # emb (mean|std)
        ],
        out_specs=pl.BlockSpec((block_b, T, D), lambda i, seq: (i, 0, 0)),
    )

    return pl.pallas_call(
        functools.partial(mvemb_kernel, block_b=block_b),
        out_shape=jax.ShapeDtypeStruct((B, T, D), x.dtype),
        grid_spec=grid_spec,
        compiler_params=pltpu.CompilerParams(**compiler_kwargs),
    )(seq_length.astype(jnp.int32), x, emb)


def _reference(x, seq_length, speaker_id, emb_table, emb_dim):
    # pure-JAX reference mirroring the PyTorch forward
    B, T, D = x.shape
    emb = emb_table[speaker_id]
    mean_emb = emb[:, :emb_dim]
    std_emb = emb[:, emb_dim:]
    ids = jnp.arange(T)[None, :]
    mask = (ids < seq_length[:, None]).astype(x.dtype)[:, :, None]   # (B,T,1)
    xm = x * mask
    lens = seq_length.astype(x.dtype)[:, None]
    s_mean = jnp.sum(xm, axis=1) / lens                               # (B,D)
    x_cut = (x - s_mean[:, None, :]) * mask
    s_var = jnp.sum(x_cut * x_cut, axis=1) / lens
    s_std = jnp.sqrt(s_var + EPSILON)
    norm_x = (x - s_mean[:, None, :]) / s_std[:, None, :]
    return norm_x * std_emb[:, None, :] + mean_emb[:, None, :]


if __name__ == "__main__":
    B, T, D = 2, 16, 32
    num_of_spk = 5

    key = jax.random.PRNGKey(0)
    kx, ktab = jax.random.split(key)

    x = jax.random.normal(kx, (B, T, D), dtype=jnp.float32)
    seq_length = jnp.array([12, 16], dtype=jnp.int32)
    speaker_id = jnp.array([1, 3], dtype=jnp.int32)
    # deterministic synthetic parameters for nn.Embedding(num_of_spk, 2*D)
    emb_table = jax.random.normal(ktab, (num_of_spk, 2 * D), dtype=jnp.float32)

    out = mvemb_condition_forward(x, seq_length, speaker_id, emb_table, D)
    out = jax.block_until_ready(out)

    ref = _reference(x, seq_length, speaker_id, emb_table, D)
    assert out.shape == (B, T, D)
    assert jnp.allclose(out, ref, atol=1e-4, rtol=1e-4), "mismatch vs reference"

    print("KERNEL_OK")
</pallas_src>

<mosaic_0001>
module attributes {stable_mosaic.version = 11 : i64} {
  func.func @mvemb_kernel(%arg0: i32, %arg1: memref<2xi32, #tpu.memory_space<smem>>, %arg2: memref<1x16x32xf32, #tpu.memory_space<vmem>>, %arg3: memref<1x2x32xf32, #tpu.memory_space<vmem>>, %arg4: memref<1x16x32xf32, #tpu.memory_space<vmem>>) attributes {dimension_semantics = [#tpu.dimension_semantics<parallel>], iteration_bounds = array<i64: 2>, scalar_prefetch = 1 : i64, scratch_operands = 0 : i64, tpu.core_type = #tpu.core_type<tc>, window_params = [{transform_indices = @transform_0, window_bounds = array<i64: 1, 16, 32>}, {transform_indices = @transform_1, window_bounds = array<i64: 1, 2, 32>}, {transform_indices = @transform_2, window_bounds = array<i64: 1, 16, 32>}]} {
    %0 = tpu.iota {dimensions = array<i32: 0>} : vector<16x1xi32>
    %c1_i32 = arith.constant 1 : i32
    %1 = arith.muli %arg0, %c1_i32 : i32
    %c0_i32 = arith.constant 0 : i32
    %2 = arith.addi %1, %c0_i32 : i32
    %3 = arith.index_cast %2 : i32 to index
    %4 = memref.load %arg1[%3] : memref<2xi32, #tpu.memory_space<smem>>
    %5 = arith.sitofp %4 : i32 to f32
    %cst = arith.constant 1.000000e+00 : f32
    %6 = arith.maximumf %5, %cst : f32
    %cst_0 = arith.constant 1.000000e+00 : f32
    %7 = arith.divf %cst_0, %6 : f32
    %c0 = arith.constant 0 : index
    %c0_1 = arith.constant 0 : index
    %c0_2 = arith.constant 0 : index
    %8 = vector.load %arg2[%c0, %c0_1, %c0_2] : memref<1x16x32xf32, #tpu.memory_space<vmem>>, vector<1x16x32xf32>
    %9 = vector.shape_cast %8 : vector<1x16x32xf32> to vector<16x32xf32>
    %10 = vector.broadcast %4 : i32 to vector<16x1xi32>
    %11 = arith.cmpi slt, %0, %10 : vector<16x1xi32>
    %12 = arith.extui %11 : vector<16x1xi1> to vector<16x1xi32>
    %13 = arith.sitofp %12 : vector<16x1xi32> to vector<16x1xf32>
    %14 = vector.broadcast %13 : vector<16x1xf32> to vector<16x32xf32>
    %15 = arith.mulf %9, %14 : vector<16x32xf32>
    %cst_3 = arith.constant dense<0.000000e+00> : vector<32xf32>
    %16 = vector.multi_reduction <add>, %15, %cst_3 [0] : vector<16x32xf32> to vector<32xf32>
    %17 = vector.shape_cast %16 : vector<32xf32> to vector<1x32xf32>
    %18 = arith.mulf %15, %9 : vector<16x32xf32>
    %cst_4 = arith.constant dense<0.000000e+00> : vector<32xf32>
    %19 = vector.multi_reduction <add>, %18, %cst_4 [0] : vector<16x32xf32> to vector<32xf32>
    %20 = vector.shape_cast %19 : vector<32xf32> to vector<1x32xf32>
    %21 = vector.broadcast %7 : f32 to vector<1x32xf32>
    %22 = arith.mulf %17, %21 : vector<1x32xf32>
    %23 = vector.broadcast %7 : f32 to vector<1x32xf32>
    %24 = arith.mulf %20, %23 : vector<1x32xf32>
    %25 = arith.mulf %22, %22 : vector<1x32xf32>
    %26 = arith.subf %24, %25 : vector<1x32xf32>
    %cst_5 = arith.constant 0.000000e+00 : f32
    %27 = vector.broadcast %cst_5 : f32 to vector<1x32xf32>
    %28 = arith.maximumf %26, %27 : vector<1x32xf32>
    %cst_6 = arith.constant 9.99999974E-6 : f32
    %29 = vector.broadcast %cst_6 : f32 to vector<1x32xf32>
    %30 = arith.addf %28, %29 : vector<1x32xf32>
    %31 = math.rsqrt %30 : vector<1x32xf32>
    %c0_7 = arith.constant 0 : index
    %c0_8 = arith.constant 0 : index
    %c0_9 = arith.constant 0 : index
    %32 = vector.load %arg3[%c0_7, %c0_8, %c0_9] : memref<1x2x32xf32, #tpu.memory_space<vmem>>, vector<1x2x32xf32>
    %33 = vector.shape_cast %32 : vector<1x2x32xf32> to vector<2x32xf32>
    %34 = vector.extract_strided_slice %33 {offsets = [0, 0], sizes = [1, 32], strides = [1, 1]} : vector<2x32xf32> to vector<1x32xf32>
    %35 = vector.extract_strided_slice %33 {offsets = [1, 0], sizes = [1, 32], strides = [1, 1]} : vector<2x32xf32> to vector<1x32xf32>
    %36 = arith.mulf %35, %31 : vector<1x32xf32>
    %37 = arith.mulf %22, %36 : vector<1x32xf32>
    %38 = arith.subf %34, %37 : vector<1x32xf32>
    %39 = vector.broadcast %36 : vector<1x32xf32> to vector<16x32xf32>
    %40 = arith.mulf %9, %39 : vector<16x32xf32>
    %41 = vector.broadcast %38 : vector<1x32xf32> to vector<16x32xf32>
    %42 = arith.addf %40, %41 : vector<16x32xf32>
    %c0_10 = arith.constant 0 : index
    %c0_11 = arith.constant 0 : index
    %c0_12 = arith.constant 0 : index
    %43 = vector.load %arg4[%c0_10, %c0_11, %c0_12] : memref<1x16x32xf32, #tpu.memory_space<vmem>>, vector<1x16x32xf32>
    %44 = vector.shape_cast %43 : vector<1x16x32xf32> to vector<16x32xf32>
    %45 = vector.shape_cast %42 : vector<16x32xf32> to vector<1x16x32xf32>
    tpu.vector_store %arg4[%c0_10, %c0_11, %c0_12], %45 {strides = array<i32>} : memref<1x16x32xf32, #tpu.memory_space<vmem>>, vector<1x16x32xf32>,
    return
  }
  func.func @transform_0(%arg0: i32, %arg1: memref<2xi32, #tpu.memory_space<smem>>) -> (i32, i32, i32) {
    %c0_i32 = arith.constant 0 : i32
    %c0_i32_0 = arith.constant 0 : i32
    %c0_i32_1 = arith.constant 0 : i32
    return %arg0, %c0_i32, %c0_i32_0 : i32, i32, i32
  }
  func.func @transform_1(%arg0: i32, %arg1: memref<2xi32, #tpu.memory_space<smem>>) -> (i32, i32, i32) {
    %c0_i32 = arith.constant 0 : i32
    %c0_i32_0 = arith.constant 0 : i32
    %c0_i32_1 = arith.constant 0 : i32
    return %arg0, %c0_i32, %c0_i32_0 : i32, i32, i32
  }
  func.func @transform_2(%arg0: i32, %arg1: memref<2xi32, #tpu.memory_space<smem>>) -> (i32, i32, i32) {
    %c0_i32 = arith.constant 0 : i32
    %c0_i32_0 = arith.constant 0 : i32
    %c0_i32_1 = arith.constant 0 : i32
    return %arg0, %c0_i32, %c0_i32_0 : i32, i32, i32
  }
}

</mosaic_0001>

<llo_original>
// kernel: tpu_custom_call.1
$region0: #{tpu_custom_call.1}
  #allocation0 [shape = 'u32[]', space=smem, size = 0x4, offset = 0x4, fixed_abs, tag = 'smem constant byte address 0x4 - core index']
  #allocation1 [shape = 'u32[144,128]{1,0:T(1,128)}', space=vmem, size = 0x12000, scoped, tag = 'internal scratch']
  #allocation2 [shape = 's32[1]{0}', space=sflag, size = 0x4, scoped, tag = 'scoped memory for tpu_custom_call.1']
  #allocation3 [shape = 'u8[512]{0}', space=smem, size = 0x200, scoped, tag = 'prefetched SMEM operand 0']
  %s0 = inlined_call_operand.hbm [shape: s32[2], index: 0, kind: input, shape index: {}]
  %s1 = inlined_call_operand.hbm [shape: f32[2,16,32], index: 1, kind: input, shape index: {}]
  %s2 = inlined_call_operand.vmem [shape: f32[2,2,32], index: 2, kind: input, shape index: {}]
  %s3 = inlined_call_operand.hbm [shape: f32[2,16,32], index: 3, kind: output, shape index: {}]
  %s4 = sld [smem:[#allocation0]]
  $region45: #{tpu_custom_call.1} parent=0
    _
  %s6 = ssub.s32 1, %s4
  %s7 = scalar_select 0, %s6, %s4
  %9 = dma.hbm_to_smem %s0, 16, [#allocation3], [#allocation2]
  %10 = dma.done [#allocation2], 16
  %11 = sfence
  $region1: #{tpu_custom_call.1} parent=0
    #allocation4 [shape = 'u8[16384]{0}', space=vmem, size = 0x4000, scoped, tag = 'input window, operand 1']
    #allocation5 [shape = 's32[2]{0}', space=sflag, size = 0x8, scoped, tag = 'scoped memory for tpu_custom_call.1']
    #allocation6 [shape = 's32[2]{0}', space=sflag, size = 0x8, scoped, tag = 'scoped memory for tpu_custom_call.1']
    #allocation7 [shape = 'u8[16384]{0}', space=vmem, size = 0x4000, scoped, tag = 'output window, operand 0']
    %12 = vsyncpa [#allocation5], 0
    %s13 = scalar_lea.sflag [#allocation5], 1
    %14 = vsyncpa %s13, 0
    %15 = vsyncpa [#allocation6], 0
    %s16 = scalar_lea.sflag [#allocation6], 1
    %17 = vsyncpa %s16, 0
    loop: start=0, step=1, limit=4
    $region2: #{tpu_custom_call.1} parent=1 // loop_pre_header
      _
    $region3: #{tpu_custom_call.1} parent=1 // loop_header
      %s19 = sphi 0, %s23
      %p20 = scmp.ge.s32.totalorder %s19, 4
      %s29 = sphi 0, %s31
      %s32 = sphi 0, %s29
      %s33 = sphi 0, %s32
      %s49 = sphi 0, %s33
      %s55 = sphi 0, %s57
      %s58 = sphi 0, %s55
      %s59 = sphi 0, %s58
      %s75 = sphi 0, %s59
      %s81 = sphi 0, %s83
      %s84 = sphi 0, %s81
      %s85 = sphi 0, %s84
      %s101 = sphi 0, %s85
    $region4: #{tpu_custom_call.1} parent=1 // loop_header_branch
      %22 = sbr.rel (%p20) target = $region8
    $region5: #{tpu_custom_call.1} parent=1 // loop_body
      %s24 = ssub.s32 %s19, 1
      %s25 = ssub.s32 %s19, 2
      %s26 = sadd.s32 %s19, 1
      %s27 = ssub.s32 %s19, %s26
      %p28 = scmp.eq.s32.totalorder %s27, 0
      %s30 = sadd.s32 %s29, 1
      %s31 = scalar_select %p28, %s29, %s30
      %p34 = pneg %p28
      %p35 = scmp.eq.s32.totalorder %s19, 1
      %p36 = por %p34, %p35
      %p37 = scmp.ne.s32.totalorder %s29, %s32
      %p38 = scmp.eq.s32.totalorder %s19, 0
      %p39 = por %p37, %p38
      %p40 = scmp.ne.s32.totalorder %s29, %s32
      %p41 = scmp.eq.s32.totalorder %s24, 1
      %p42 = por %p40, %p41
      %p43 = scmp.ne.s32.totalorder %s32, %s33
      %p44 = scmp.eq.s32.totalorder %s24, 0
      %p45 = por %p43, %p44
      %p46 = scmp.ne.s32.totalorder %s32, %s33
      %p47 = scmp.eq.s32.totalorder %s25, 1
      %p48 = por %p46, %p47
      %p50 = scmp.ne.s32.totalorder %s33, %s49
      %p51 = scmp.eq.s32.totalorder %s25, 0
      %p52 = por %p50, %p51
      %s53 = ssub.s32 %s19, %s26
      %p54 = scmp.eq.s32.totalorder %s53, 0
      %s56 = sadd.s32 %s55, 1
      %s57 = scalar_select %p54, %s55, %s56
      %p60 = pneg %p54
      %p61 = scmp.eq.s32.totalorder %s19, 1
      %p62 = por %p60, %p61
      %p63 = scmp.ne.s32.totalorder %s55, %s58
      %p64 = scmp.eq.s32.totalorder %s19, 0
      %p65 = por %p63, %p64
      %p66 = scmp.ne.s32.totalorder %s55, %s58
      %p67 = scmp.eq.s32.totalorder %s24, 1
      %p68 = por %p66, %p67
      %p69 = scmp.ne.s32.totalorder %s58, %s59
      %p70 = scmp.eq.s32.totalorder %s24, 0
      %p71 = por %p69, %p70
      %p72 = scmp.ne.s32.totalorder %s58, %s59
      %p73 = scmp.eq.s32.totalorder %s25, 1
      %p74 = por %p72, %p73
      %p76 = scmp.ne.s32.totalorder %s59, %s75
      %p77 = scmp.eq.s32.totalorder %s25, 0
      %p78 = por %p76, %p77
      %s79 = ssub.s32 %s19, %s26
      %p80 = scmp.eq.s32.totalorder %s79, 0
      %s82 = sadd.s32 %s81, 1
      %s83 = scalar_select %p80, %s81, %s82
      %p86 = pneg %p80
      %p87 = scmp.eq.s32.totalorder %s19, 1
      %p88 = por %p86, %p87
      %p89 = scmp.ne.s32.totalorder %s81, %s84
      %p90 = scmp.eq.s32.totalorder %s19, 0
      %p91 = por %p89, %p90
      %p92 = scmp.ne.s32.totalorder %s81, %s84
      %p93 = scmp.eq.s32.totalorder %s24, 1
      %p94 = por %p92, %p93
      %p95 = scmp.ne.s32.totalorder %s84, %s85
      %p96 = scmp.eq.s32.totalorder %s24, 0
      %p97 = por %p95, %p96
      %p98 = scmp.ne.s32.totalorder %s84, %s85
      %p99 = scmp.eq.s32.totalorder %s25, 1
      %p100 = por %p98, %p99
      %p102 = scmp.ne.s32.totalorder %s85, %s101
      %p103 = scmp.eq.s32.totalorder %s25, 0
      %p104 = por %p102, %p103
      %p105 = scmp.le.s32.totalorder 1, %s19
      %p106 = scmp.lt.s32.totalorder %s19, 3
      %p107 = pnand %p105, %p106
      %p108 = pneg %p107
      // Predicated region
      $region9: #{tpu_custom_call.1} parent=5 // pred_check
        _
      $region10: #{tpu_custom_call.1} parent=5 // pred_check_branch
        %110 = sbr.rel (%p107) target = $region12
      $region11: #{tpu_custom_call.1} parent=5 // pred_region
        %s111 = ssub.s32 %s19, 1
      $region12: #{tpu_custom_call.1} parent=5 // pred_fallthru
        _
      %p112 = scmp.lt.s32.totalorder %s19, 2
      // Predicated region
      $region13: #{tpu_custom_call.1} parent=5 // pred_check
        %p113 = pneg %p112
      $region14: #{tpu_custom_call.1} parent=5 // pred_check_branch
        %115 = sbr.rel (%p113) target = $region16
      $region15: #{tpu_custom_call.1} parent=5 // pred_region
        // Predicated region
        $region17: #{tpu_custom_call.1} parent=15 // pred_check
          %p116 = pneg %p39
        $region18: #{tpu_custom_call.1} parent=15 // pred_check_branch
          %118 = sbr.rel (%p116) target = $region20
        $region19: #{tpu_custom_call.1} parent=15 // pred_region
          %s119 = sand.u32 %s29, 1
          %s120 = scalar_lea.sflag [#allocation5], %s119
          %s121 = sand.u32 %s29, 1
          %s122 = smul.addr %s121, 16
          %s123 = scalar_lea.vmem [#allocation4], %s122
          %s125 = ssub.s32 256, 256
          %126 = vsyncadd %s120, %s125
          %s127 = smul.addr %s19, 2
          %s128 = smul.addr %s127, 128
          %s129 = scalar_lea.hbm %s1, %s128
          %s130 = sshll.u32 %s123, 4
          %s131 = int_to_ptr.vmem [resolvable:$true] %s130
          %136 = dma.hbm_to_vmem [thread:$0]  %s129, 256, %s131, %s120, 128, 128, 8
        $region20: #{tpu_custom_call.1} parent=15 // pred_fallthru
          _
        // Predicated region
        $region21: #{tpu_custom_call.1} parent=15 // pred_check
          %p137 = pneg %p65
        $region22: #{tpu_custom_call.1} parent=15 // pred_check_branch
          %139 = sbr.rel (%p137) target = $region24
        $region23: #{tpu_custom_call.1} parent=15 // pred_region
          %p140 = scmp.lt.s32.totalorder %s19, 1
          %s141 = scalar_select %p140, %s19, 1
          %s142 = smul.addr %s141, 2
          %s143 = scalar_lea.vmem %s2, %s142
        $region24: #{tpu_custom_call.1} parent=15 // pred_fallthru
          _
      $region16: #{tpu_custom_call.1} parent=5 // pred_fallthru
        _
      %p144 = scmp.le.s32.totalorder 1, %s19
      %p145 = scmp.lt.s32.totalorder %s19, 3
      %p146 = pnand %p144, %p145
      %p147 = pneg %p146
      // Predicated region
      $region25: #{tpu_custom_call.1} parent=5 // pred_check
        _
      $region26: #{tpu_custom_call.1} parent=5 // pred_check_branch
        %149 = sbr.rel (%p146) target = $region28
      $region27: #{tpu_custom_call.1} parent=5 // pred_region
        %s150 = ssub.s32 %s19, 1
        %s151 = sand.u32 %s32, 1
        %s152 = scalar_lea.sflag [#allocation5], %s151
        %s153 = sand.u32 %s32, 1
        %s154 = smul.addr %s153, 16
        %s155 = scalar_lea.vmem [#allocation4], %s154
        // Predicated region
        $region29: #{tpu_custom_call.1} parent=27 // pred_check
          %p156 = pneg %p45
        $region30: #{tpu_custom_call.1} parent=27 // pred_check_branch
          %158 = sbr.rel (%p156) target = $region32
        $region31: #{tpu_custom_call.1} parent=27 // pred_region
          %159 = dma.done %s152, 256
        $region32: #{tpu_custom_call.1} parent=27 // pred_fallthru
          _
        %s160 = sand.u32 %s32, 1
        %s161 = scalar_lea.sflag [#allocation5], %s160
        %s162 = sand.u32 %s32, 1
        %s163 = smul.addr %s162, 16
        %s164 = scalar_lea.vmem [#allocation4], %s163
        %p165 = pneg %p45
        %p166 = pneg %p42
        %p167 = scmp.lt.s32.totalorder %s24, 1
        %s168 = scalar_select %p167, %s24, 1
        %s169 = smul.addr %s168, 2
        %s170 = scalar_lea.vmem %s2, %s169
        %p171 = pneg %p71
        %p172 = pneg %p68
        %p173 = pneg %p97
        %p174 = pneg %p94
        %s175 = sand.u32 %s84, 1
        %s176 = scalar_lea.sflag [#allocation6], %s175
        %s177 = sand.u32 %s84, 1
        %s178 = smul.addr %s177, 16
        %s179 = scalar_lea.vmem [#allocation7], %s178
        %p180 = scmp.lt.s32.totalorder %s24, 1
        %s181 = scalar_select %p180, %s24, 1
        %s182 = smul.addr %s181, 2
        %s183 = scalar_lea.vmem %s2, %s182
        %v184 = vlaneseq
        %v185 = vshrl.u32 %v184, 7
        %v186 = vadd.s32 %v185, 8
        %s187 = sld [smem:[#allocation3 + %s24]]
        %s188 = scvt.s32.f32 %s187
        %s189 = smax.f32 %s188, 1.0
        %v190 = vstv %s189
        %v191 = vrcp.pop %v190
        %s192 = vtos %v191
        %v193 = vld [vmem:[%s155] sm:$0xff]
        %v194 = vld [vmem:[%s155 + $0x8] sm:$0xff]
        %v195 = vstv %s187
        %vm196 = vcmp.lt.s32.totalorder %v185, %v195
        %vm197 = vcmp.lt.s32.totalorder %v186, %v195
        %v198 = vsel %vm196, 1, 0
        %v199 = vsel %vm197, 1, 0
        %v200 = vcvt.s32.f32 %v198
        %v201 = vcvt.s32.f32 %v199
        %v202 = vmul.f32 %v193, %v200
        %v203 = vmul.f32 %v194, %v201
        %vm204 = vcmask 261120
        %v205 = vsel %vm204, %v202, 0.0
        %v206 = vsel %vm204, %v203, 0.0
        %v207 = vadd.f32 %v205, %v206
        %v208 = vrot.slane %v207, 4
        %v209 = vadd.f32 %v207, %v208
        %v210 = vrot.slane %v209, 2
        %v211 = vadd.f32 %v209, %v210
        %v212 = vrot.slane %v211, 1
        %v213 = vadd.f32 %v211, %v212
        %v214 = vmul.f32 %v202, %v193
        %v215 = vmul.f32 %v203, %v194
        %v216 = vsel %vm204, %v214, 0.0
        %v217 = vsel %vm204, %v215, 0.0
        %v218 = vadd.f32 %v216, %v217
        %v219 = vrot.slane %v218, 4
        %v220 = vadd.f32 %v218, %v219
        %v221 = vrot.slane %v220, 2
        %v222 = vadd.f32 %v220, %v221
        %v223 = vrot.slane %v222, 1
        %v224 = vadd.f32 %v222, %v223
        %v225 = vstv %s192
        %v226 = vmul.f32 %v213, %v225
        %v227 = vmul.f32 %v224, %v225
        %v228 = vmul.f32 %v226, %v226
        %v229 = vsub.f32 %v227, %v228
        %v230 = vmax.f32 %v229, 0.0
        %v231 = vadd.f32 %v230, 1e-05
        %v232 = vrsqrt.pop %v231
        %v233 = vld [vmem:[%s183] sm:$0x3]
        %v234 = vmul.f32 %v233, %v232
        %v235 = vmul.f32 %v226, %v234
        %v237 = vrot.slane %v235, 1
        %v239 = vsub.f32 %v233, %v237
        %v240 = vlaneseq
        %v241 = vshrl.u32 %v240, 7
        %v242 = vsub.s32 1, %v241
        %v243 = vrot.slane %v234, %v242
        %v244 = vmul.f32 %v193, %v243
        %v245 = vmul.f32 %v194, %v243
        %v246 = vlaneseq
        %v247 = vshrl.u32 %v246, 7
        %v248 = vsub.s32 0, %v247
        %v249 = vrot.slane %v239, %v248
        %v250 = vadd.f32 %v244, %v249
        %v251 = vadd.f32 %v245, %v249
        %252 = vst.msk [vmem:[%s179] sm:$0xff] %vm204, %v250
        %253 = vst.msk [vmem:[%s179 + $0x8] sm:$0xff] %vm204, %v251
        %s254 = sand.u32 %s84, 1
        %s255 = scalar_lea.sflag [#allocation6], %s254
        %s256 = sand.u32 %s84, 1
        %s257 = smul.addr %s256, 16
        %s258 = scalar_lea.vmem [#allocation7], %s257
        // Predicated region
        $region33: #{tpu_custom_call.1} parent=27 // pred_check
          %p259 = pneg %p94
        $region34: #{tpu_custom_call.1} parent=27 // pred_check_branch
          %261 = sbr.rel (%p259) target = $region36
        $region35: #{tpu_custom_call.1} parent=27 // pred_region
          %s263 = ssub.s32 256, 256
          %264 = vsyncadd %s255, %s263
          %s265 = smul.addr %s24, 2
          %s266 = smul.addr %s265, 128
          %s267 = scalar_lea.hbm %s3, %s266
          %s268 = sshll.u32 %s258, 4
          %s269 = int_to_ptr.vmem [resolvable:$true] %s268
          %274 = dma.vmem_to_hbm [thread:$0]  %s269, 256, %s267, %s255, 128, 128, 8
        $region36: #{tpu_custom_call.1} parent=27 // pred_fallthru
          _
      $region28: #{tpu_custom_call.1} parent=5 // pred_fallthru
        _
      %p275 = scmp.le.s32.totalorder 2, %s19
      // Predicated region
      $region37: #{tpu_custom_call.1} parent=5 // pred_check
        %p276 = pneg %p275
      $region38: #{tpu_custom_call.1} parent=5 // pred_check_branch
        %278 = sbr.rel (%p276) target = $region40
      $region39: #{tpu_custom_call.1} parent=5 // pred_region
        %s279 = ssub.s32 %s19, 2
        // Predicated region
        $region41: #{tpu_custom_call.1} parent=39 // pred_check
          %p280 = pneg %p100
        $region42: #{tpu_custom_call.1} parent=39 // pred_check_branch
          %282 = sbr.rel (%p280) target = $region44
        $region43: #{tpu_custom_call.1} parent=39 // pred_region
          %s283 = sand.u32 %s85, 1
          %s284 = scalar_lea.sflag [#allocation6], %s283
          %s285 = sand.u32 %s85, 1
          %s286 = smul.addr %s285, 16
          %s287 = scalar_lea.vmem [#allocation7], %s286
          %288 = dma.done %s284, 256
        $region44: #{tpu_custom_call.1} parent=39 // pred_fallthru
          _
      $region40: #{tpu_custom_call.1} parent=5 // pred_fallthru
        _
    $region6: #{tpu_custom_call.1} parent=1 // loop_footer
      %s23 = sadd.s32 1, %s19
    $region7: #{tpu_custom_call.1} parent=1 // loop_footer_branch
      %18 = sbr.rel target = $region3
    $region8: #{tpu_custom_call.1} parent=1 // loop_exit
      _
    %289 = vsyncpa [#allocation5], 1
    %s290 = scalar_lea.sflag [#allocation5], 1
    %291 = vsyncpa %s290, 1
    %292 = vsyncpa [#allocation6], 1
    %s293 = scalar_lea.sflag [#allocation6], 1
    %294 = vsyncpa %s293, 1

</llo_original>
